<compile_context>
chip_gen: v6e
topology: v6e:2x2x1
jax: 0.10.0
libtpu: 0.0.40
codegen_flags: <defaults>
</compile_context>

<pallas_src>
import functools

import jax
import jax.numpy as jnp
from jax.experimental import pallas as pl
from jax.experimental.pallas import tpu as pltpu

LANE = 128          # TPU lane width; matmul N dims padded to this (and only this)
H1, H2 = 64, 32     # hidden widths fixed by the Actor_Net module
TM_CAP = 1024       # batch-tile cap (mem/overhead-bound kernel; big tiles win)
SPLIT_MIN = 512     # below this, one exact full-array tile (no padding at all)


def _round_up(n, m):
    return ((n + m - 1) // m) * m


def _cdiv(a, b):
    return (a + b - 1) // b


def actor_net_kernel(x_ref, w_ref, b_ref, out_ref, *, state_dim, s_pad):
    """Fused 3-layer MLP forward on one (tm, state_dim) batch tile.

    x_ref  : (tm, state_dim) f32 batch tile
    w_ref  : (s_pad + 2*LANE, LANE) f32 packed weights (resident in VMEM)
             rows [0, state_dim)             -> W1 (state -> 64)
             rows [s_pad, s_pad+LANE)        -> W2 (64 -> 32), zero padded
             rows [s_pad+LANE, s_pad+2*LANE) -> W3 (32 -> action), zero padded
    b_ref  : (8, LANE) f32; rows 0/1/2 = b1/b2/b3, zero padded
    out_ref: (tm, LANE) bf16 lane-dense output tile
    """
    x = x_ref[...].astype(jnp.bfloat16)                         # (tm, state_dim)

    # Per-matmul bf16 casts of the resident f32 slab (trivial VPU work).
    w1 = w_ref[0:state_dim, :].astype(jnp.bfloat16)             # (state_dim, 128)
    w2 = w_ref[s_pad:s_pad + LANE, :].astype(jnp.bfloat16)      # (128, 128)
    w3 = w_ref[s_pad + LANE:s_pad + 2 * LANE, :].astype(jnp.bfloat16)

    b1 = b_ref[0:1, :]
    b2 = b_ref[1:2, :]
    b3 = b_ref[2:3, :]

    # fc1 + ReLU  (bf16 operands on the MXU, f32 accumulation & elementwise)
    h1 = jnp.dot(x, w1, preferred_element_type=jnp.float32) + b1
    h1 = jnp.maximum(h1, 0.0)                                   # cols >= 64 stay 0

    # fc2 + ReLU
    h2 = jnp.dot(h1.astype(jnp.bfloat16), w2,
                 preferred_element_type=jnp.float32) + b2
    h2 = jnp.maximum(h2, 0.0)                                   # cols >= 32 stay 0

    # fc3 + Sigmoid (padded cols give sigmoid(0)=0.5; sliced away in wrapper)
    h3 = jnp.dot(h2.astype(jnp.bfloat16), w3,
                 preferred_element_type=jnp.float32) + b3
    out_ref[...] = jax.nn.sigmoid(h3).astype(out_ref.dtype)     # lane-dense bf16 store


def init_actor_net_params(key, state_dim, action_dim):
    """Mirror the PyTorch init: weights ~ N(0, 0.1), biases ~ N(0.1, 1.0).
    Weights stored as (in_features, out_features) == PyTorch weight.T."""
    ks = jax.random.split(key, 6)
    return {
        "w1": 0.1 * jax.random.normal(ks[0], (state_dim, H1), jnp.float32),
        "b1": 0.1 + jax.random.normal(ks[1], (1, H1), jnp.float32),
        "w2": 0.1 * jax.random.normal(ks[2], (H1, H2), jnp.float32),
        "b2": 0.1 + jax.random.normal(ks[3], (1, H2), jnp.float32),
        "w3": 0.1 * jax.random.normal(ks[4], (H2, action_dim), jnp.float32),
        "b3": 0.1 + jax.random.normal(ks[5], (1, action_dim), jnp.float32),
    }


def pack_actor_net_params(params, state_dim, action_dim):
    """Pack all weights into one f32 lane-padded slab and biases into one slab.
    Do this ONCE and reuse across calls (single resident weight DMA, no
    pack-time quantization)."""
    s_pad = _round_up(max(state_dim, 1), 8)     # f32 sublane-tile aligned regions
    w = jnp.zeros((s_pad + 2 * LANE, LANE), jnp.float32)
    w = w.at[0:state_dim, 0:H1].set(params["w1"])
    w = w.at[s_pad:s_pad + H1, 0:H2].set(params["w2"])
    w = w.at[s_pad + LANE:s_pad + LANE + H2, 0:action_dim].set(params["w3"])

    b = jnp.zeros((8, LANE), jnp.float32)
    b = b.at[0, 0:H1].set(params["b1"].reshape(-1))
    b = b.at[1, 0:H2].set(params["b2"].reshape(-1))
    b = b.at[2, 0:action_dim].set(params["b3"].reshape(-1))
    return w, b


def _choose_batch_tile(B):
    """Pick (tm, grid).  Small B: one exact full-array tile (no padding, no
    garbage rows).  Large B: big tiles (cap 1024) with >= 2 grid steps so both
    v7x TensorCores are used; any partial last tile is masked by Pallas."""
    if B < SPLIT_MIN:
        return B, 1
    num_steps = max(2, _cdiv(B, TM_CAP))
    tm = _round_up(_cdiv(B, num_steps), 16)
    return tm, _cdiv(B, tm)


@functools.partial(jax.jit, static_argnames=("state_dim", "action_dim"))
def actor_net_forward(x, w_packed, b_packed, *, state_dim, action_dim):
    """x: (B, state_dim) -> (B, action_dim) float32."""
    B = x.shape[0]
    s_pad = _round_up(max(state_dim, 1), 8)
    tm, grid = _choose_batch_tile(B)

    kernel = functools.partial(actor_net_kernel, state_dim=state_dim, s_pad=s_pad)

    cost = pl.CostEstimate(
        flops=2 * B * LANE * (state_dim + 2 * LANE),
        transcendentals=B * LANE,
        bytes_accessed=(B * state_dim * 4            # x read
                        + B * LANE * 2               # bf16 output write
                        + int(w_packed.size) * 4 + int(b_packed.size) * 4),
    )

    out = pl.pallas_call(
        kernel,
        out_shape=jax.ShapeDtypeStruct((B, LANE), jnp.bfloat16),
        grid_spec=pltpu.PrefetchScalarGridSpec(
            num_scalar_prefetch=0,
            grid=(grid,),
            in_specs=[
                pl.BlockSpec((tm, state_dim), lambda i: (i, 0)),   # batch tile
                pl.BlockSpec(w_packed.shape, lambda i: (0, 0)),    # resident W
                pl.BlockSpec(b_packed.shape, lambda i: (0, 0)),    # resident b
            ],
            out_specs=pl.BlockSpec((tm, LANE), lambda i: (i, 0)),
        ),
        compiler_params=pltpu.CompilerParams(
            dimension_semantics=("parallel",),  # both TCs on v7x; no-op elsewhere
        ),
        cost_estimate=cost,
    )(x.astype(jnp.float32), w_packed, b_packed)

    return out[:, :action_dim].astype(jnp.float32)


if __name__ == "__main__":
    key = jax.random.PRNGKey(0)
    state_dim, action_dim, batch = 8, 4, 2

    pkey, xkey = jax.random.split(key)
    params = init_actor_net_params(pkey, state_dim, action_dim)
    w_packed, b_packed = pack_actor_net_params(params, state_dim, action_dim)

    x = jax.random.normal(xkey, (batch, state_dim), jnp.float32)

    out = actor_net_forward(x, w_packed, b_packed,
                            state_dim=state_dim, action_dim=action_dim)
    jax.block_until_ready(out)

    assert out.shape == (batch, action_dim)
    assert bool(jnp.all((out >= 0.0) & (out <= 1.0)))

    # plain-JAX f32 reference (kernel uses bf16 matmul operands and a bf16
    # output store -> loose atol)
    def ref(xx):
        h1 = jnp.maximum(xx @ params["w1"] + params["b1"], 0.0)
        h2 = jnp.maximum(h1 @ params["w2"] + params["b2"], 0.0)
        return jax.nn.sigmoid(h2 @ params["w3"] + params["b3"])

    assert bool(jnp.allclose(out, ref(x), atol=2e-2, rtol=0.0))

    # larger, non-multiple-of-8 batch exercising the full-array-tile path
    x_big = jax.random.normal(jax.random.PRNGKey(1), (300, state_dim),
                              jnp.float32)
    out_big = actor_net_forward(x_big, w_packed, b_packed,
                                state_dim=state_dim, action_dim=action_dim)
    jax.block_until_ready(out_big)
    assert out_big.shape == (300, action_dim)
    assert bool(jnp.allclose(out_big, ref(x_big), atol=2e-2, rtol=0.0))

    print("KERNEL_OK")
</pallas_src>

<mosaic_0001>
module attributes {stable_mosaic.version = 11 : i64} {
  func.func @actor_net_kernel(%arg0: i32, %arg1: memref<2x8xf32, #tpu.memory_space<vmem>>, %arg2: memref<264x128xf32, #tpu.memory_space<vmem>>, %arg3: memref<8x128xf32, #tpu.memory_space<vmem>>, %arg4: memref<2x128xbf16, #tpu.memory_space<vmem>>) attributes {dimension_semantics = [#tpu.dimension_semantics<parallel>], iteration_bounds = array<i64: 1>, scalar_prefetch = 0 : i64, scratch_operands = 0 : i64, tpu.core_type = #tpu.core_type<tc>, window_params = [{transform_indices = @transform_0, window_bounds = array<i64: 2, 8>}, {pipeline_mode = #tpu.pipeline_mode<synchronous>, transform_indices = @transform_1, window_bounds = array<i64: 264, 128>}, {pipeline_mode = #tpu.pipeline_mode<synchronous>, transform_indices = @transform_2, window_bounds = array<i64: 8, 128>}, {transform_indices = @transform_3, window_bounds = array<i64: 2, 128>}]} {
    %c0 = arith.constant 0 : index
    %c0_0 = arith.constant 0 : index
    %0 = vector.load %arg1[%c0, %c0_0] : memref<2x8xf32, #tpu.memory_space<vmem>>, vector<2x8xf32>
    %1 = arith.truncf %0 : vector<2x8xf32> to vector<2x8xbf16>
    %c0_1 = arith.constant 0 : index
    %c0_2 = arith.constant 0 : index
    %2 = vector.load %arg2[%c0_1, %c0_2] : memref<264x128xf32, #tpu.memory_space<vmem>>, vector<8x128xf32>
    %3 = arith.truncf %2 : vector<8x128xf32> to vector<8x128xbf16>
    %c8 = arith.constant 8 : index
    %c0_3 = arith.constant 0 : index
    %4 = vector.load %arg2[%c8, %c0_3] : memref<264x128xf32, #tpu.memory_space<vmem>>, vector<128x128xf32>
    %5 = arith.truncf %4 : vector<128x128xf32> to vector<128x128xbf16>
    %c136 = arith.constant 136 : index
    %c0_4 = arith.constant 0 : index
    %6 = vector.load %arg2[%c136, %c0_4] : memref<264x128xf32, #tpu.memory_space<vmem>>, vector<128x128xf32>
    %7 = arith.truncf %6 : vector<128x128xf32> to vector<128x128xbf16>
    %c0_5 = arith.constant 0 : index
    %c0_6 = arith.constant 0 : index
    %8 = vector.load %arg3[%c0_5, %c0_6] : memref<8x128xf32, #tpu.memory_space<vmem>>, vector<1x128xf32>
    %c1 = arith.constant 1 : index
    %c0_7 = arith.constant 0 : index
    %9 = vector.load %arg3[%c1, %c0_7] : memref<8x128xf32, #tpu.memory_space<vmem>>, vector<1x128xf32>
    %c2 = arith.constant 2 : index
    %c0_8 = arith.constant 0 : index
    %10 = vector.load %arg3[%c2, %c0_8] : memref<8x128xf32, #tpu.memory_space<vmem>>, vector<1x128xf32>
    %cst = arith.constant dense<0.000000e+00> : vector<2x128xf32>
    %11 = tpu.matmul %1, %3, %cst {dimension_numbers = #tpu.dot_dimension_numbers<[1], [0], [0], [1], [0, 0, 1, 1], [], []>} : vector<2x8xbf16>, vector<8x128xbf16>, vector<2x128xf32> -> vector<2x128xf32>
    %12 = vector.broadcast %8 : vector<1x128xf32> to vector<2x128xf32>
    %13 = arith.addf %11, %12 : vector<2x128xf32>
    %cst_9 = arith.constant 0.000000e+00 : f32
    %14 = vector.broadcast %cst_9 : f32 to vector<2x128xf32>
    %15 = arith.maximumf %13, %14 : vector<2x128xf32>
    %16 = arith.truncf %15 : vector<2x128xf32> to vector<2x128xbf16>
    %cst_10 = arith.constant dense<0.000000e+00> : vector<2x128xf32>
    %17 = tpu.matmul %16, %5, %cst_10 {dimension_numbers = #tpu.dot_dimension_numbers<[1], [0], [0], [1], [0, 0, 1, 1], [], []>} : vector<2x128xbf16>, vector<128x128xbf16>, vector<2x128xf32> -> vector<2x128xf32>
    %18 = vector.broadcast %9 : vector<1x128xf32> to vector<2x128xf32>
    %19 = arith.addf %17, %18 : vector<2x128xf32>
    %cst_11 = arith.constant 0.000000e+00 : f32
    %20 = vector.broadcast %cst_11 : f32 to vector<2x128xf32>
    %21 = arith.maximumf %19, %20 : vector<2x128xf32>
    %22 = arith.truncf %21 : vector<2x128xf32> to vector<2x128xbf16>
    %cst_12 = arith.constant dense<0.000000e+00> : vector<2x128xf32>
    %23 = tpu.matmul %22, %7, %cst_12 {dimension_numbers = #tpu.dot_dimension_numbers<[1], [0], [0], [1], [0, 0, 1, 1], [], []>} : vector<2x128xbf16>, vector<128x128xbf16>, vector<2x128xf32> -> vector<2x128xf32>
    %24 = vector.broadcast %10 : vector<1x128xf32> to vector<2x128xf32>
    %25 = arith.addf %23, %24 : vector<2x128xf32>
    %26 = arith.negf %25 : vector<2x128xf32>
    %27 = math.exp %26 : vector<2x128xf32>
    %cst_13 = arith.constant 1.000000e+00 : f32
    %28 = vector.broadcast %cst_13 : f32 to vector<2x128xf32>
    %29 = arith.addf %28, %27 : vector<2x128xf32>
    %30 = arith.divf %28, %29 : vector<2x128xf32>
    %31 = arith.truncf %30 : vector<2x128xf32> to vector<2x128xbf16>
    %c0_14 = arith.constant 0 : index
    %c0_15 = arith.constant 0 : index
    %32 = vector.load %arg4[%c0_14, %c0_15] : memref<2x128xbf16, #tpu.memory_space<vmem>>, vector<2x128xbf16>
    tpu.vector_store %arg4[%c0_14, %c0_15], %31 {strides = array<i32>} : memref<2x128xbf16, #tpu.memory_space<vmem>>, vector<2x128xbf16>,
    return
  }
  func.func @transform_0(%arg0: i32) -> (i32, i32) {
    %c0_i32 = arith.constant 0 : i32
    %c0_i32_0 = arith.constant 0 : i32
    return %arg0, %c0_i32 : i32, i32
  }
  func.func @transform_1(%arg0: i32) -> (i32, i32) {
    %c0_i32 = arith.constant 0 : i32
    %c0_i32_0 = arith.constant 0 : i32
    %c0_i32_1 = arith.constant 0 : i32
    return %c0_i32, %c0_i32_0 : i32, i32
  }
  func.func @transform_2(%arg0: i32) -> (i32, i32) {
    %c0_i32 = arith.constant 0 : i32
    %c0_i32_0 = arith.constant 0 : i32
    %c0_i32_1 = arith.constant 0 : i32
    return %c0_i32, %c0_i32_0 : i32, i32
  }
  func.func @transform_3(%arg0: i32) -> (i32, i32) {
    %c0_i32 = arith.constant 0 : i32
    %c0_i32_0 = arith.constant 0 : i32
    return %arg0, %c0_i32 : i32, i32
  }
}

</mosaic_0001>

<llo_original>
// kernel: actor_net_forward.1
$region0: #{actor_net_forward.1}
  #allocation0 [shape = 'u32[]', space=smem, size = 0x4, offset = 0x4, fixed_abs, tag = 'smem constant byte address 0x4 - core index']
  #allocation1 [shape = 'u32[144,128]{1,0:T(1,128)}', space=vmem, size = 0x12000, scoped, tag = 'internal scratch']
  %s0 = inlined_call_operand.hbm [shape: f32[2,8], index: 0, kind: input, shape index: {}]
  %s1 = inlined_call_operand.hbm [shape: f32[264,128], index: 1, kind: input, shape index: {}]
  %s2 = inlined_call_operand.hbm [shape: f32[8,128], index: 2, kind: input, shape index: {}]
  %s3 = inlined_call_operand.vmem [shape: bf16[2,128], index: 3, kind: output, shape index: {}]
  %s4 = sld [smem:[#allocation0]]
  $region34: #{actor_net_forward.1} parent=0
    _
  %s6 = ssub.s32 1, %s4
  %s7 = scalar_select 0, %s6, %s4
  $region1: #{actor_net_forward.1} parent=0
    #allocation2 [shape = 'u8[1024]{0}', space=vmem, size = 0x400, scoped, tag = 'input window, operand 0, single buffered']
    #allocation3 [shape = 's32[1]{0}', space=sflag, size = 0x4, scoped, tag = 'scoped memory for actor_net_forward.1']
    #allocation4 [shape = 'u8[135168]{0}', space=vmem, size = 0x21000, scoped, tag = 'input window, operand 1, single buffered']
    #allocation5 [shape = 's32[1]{0}', space=sflag, size = 0x4, scoped, tag = 'scoped memory for actor_net_forward.1']
    #allocation6 [shape = 'u8[4096]{0}', space=vmem, size = 0x1000, scoped, tag = 'input window, operand 2, single buffered']
    %8 = vsyncpa [#allocation3], 0
    %9 = vsyncpa [#allocation5], 0
    // Predicated region
    $region2: #{actor_net_forward.1} parent=1 // pred_check
      _
    $region3: #{actor_net_forward.1} parent=1 // pred_check_branch
      %11 = sbr.rel (0) target = $region5
    $region4: #{actor_net_forward.1} parent=1 // pred_region
      %s13 = ssub.s32 32, 32
      %14 = vsyncadd [#allocation3], %s13
      %s16 = sshll.u32 [#allocation2], 4
      %s17 = int_to_ptr.vmem [resolvable:$true] %s16
      %19 = dma.hbm_to_vmem [thread:$0]  %s0, 32, %s17, [#allocation3]
    $region5: #{actor_net_forward.1} parent=1 // pred_fallthru
      _
    // Predicated region
    $region6: #{actor_net_forward.1} parent=1 // pred_check
      _
    $region7: #{actor_net_forward.1} parent=1 // pred_check_branch
      %21 = sbr.rel (0) target = $region9
    $region8: #{actor_net_forward.1} parent=1 // pred_region
      %s23 = ssub.s32 4224, 4224
      %24 = vsyncadd [#allocation5], %s23
      %s25 = sshll.u32 [#allocation4], 4
      %s26 = int_to_ptr.vmem [resolvable:$true] %s25
      %31 = dma.hbm_to_vmem [thread:$0]  %s1, 4224, %s26, [#allocation5], 128, 128, 8
    $region9: #{actor_net_forward.1} parent=1 // pred_fallthru
      _
    // Predicated region
    $region10: #{actor_net_forward.1} parent=1 // pred_check
      _
    $region11: #{actor_net_forward.1} parent=1 // pred_check_branch
      %33 = sbr.rel (0) target = $region13
    $region12: #{actor_net_forward.1} parent=1 // pred_region
      %s35 = ssub.s32 128, 128
      %36 = vsyncadd [#allocation5], %s35
      %s38 = sshll.u32 [#allocation6], 4
      %s39 = int_to_ptr.vmem [resolvable:$true] %s38
      %41 = dma.hbm_to_vmem [thread:$0]  %s2, 128, %s39, [#allocation5]
    $region13: #{actor_net_forward.1} parent=1 // pred_fallthru
      _
    // Predicated region
    $region14: #{actor_net_forward.1} parent=1 // pred_check
      _
    $region15: #{actor_net_forward.1} parent=1 // pred_check_branch
      %43 = sbr.rel (0) target = $region17
    $region16: #{actor_net_forward.1} parent=1 // pred_region
      %44 = dma.done [#allocation3], 32
    $region17: #{actor_net_forward.1} parent=1 // pred_fallthru
      _
    // Predicated region
    $region18: #{actor_net_forward.1} parent=1 // pred_check
      _
    $region19: #{actor_net_forward.1} parent=1 // pred_check_branch
      %46 = sbr.rel (0) target = $region21
    $region20: #{actor_net_forward.1} parent=1 // pred_region
      %47 = dma.done [#allocation5], 4224
    $region21: #{actor_net_forward.1} parent=1 // pred_fallthru
      _
    // Predicated region
    $region22: #{actor_net_forward.1} parent=1 // pred_check
      _
    $region23: #{actor_net_forward.1} parent=1 // pred_check_branch
      %49 = sbr.rel (0) target = $region25
    $region24: #{actor_net_forward.1} parent=1 // pred_region
      %50 = dma.done [#allocation5], 128
    $region25: #{actor_net_forward.1} parent=1 // pred_fallthru
      _
    %v52 = vld [vmem:[#allocation2] sm:$0x3]
    %v53 = vpack.c.bf16 %v52, %v52
    %v54 = vld [vmem:[#allocation4] sm:$0xff]
    %v55 = vpack.c.bf16 %v54, %v54
    %v56 = vld [vmem:[#allocation4 + $0x8] sm:$0xff]
    %v57 = vld [vmem:[#allocation4 + $0x10] sm:$0xff]
    %v58 = vld [vmem:[#allocation4 + $0x18] sm:$0xff]
    %v59 = vld [vmem:[#allocation4 + $0x20] sm:$0xff]
    %v60 = vld [vmem:[#allocation4 + $0x28] sm:$0xff]
    %v61 = vld [vmem:[#allocation4 + $0x30] sm:$0xff]
    %v62 = vld [vmem:[#allocation4 + $0x38] sm:$0xff]
    %v63 = vld [vmem:[#allocation4 + $0x40] sm:$0xff]
    %v64 = vld [vmem:[#allocation4 + $0x48] sm:$0xff]
    %v65 = vld [vmem:[#allocation4 + $0x50] sm:$0xff]
    %v66 = vld [vmem:[#allocation4 + $0x58] sm:$0xff]
    %v67 = vld [vmem:[#allocation4 + $0x60] sm:$0xff]
    %v68 = vld [vmem:[#allocation4 + $0x68] sm:$0xff]
    %v69 = vld [vmem:[#allocation4 + $0x70] sm:$0xff]
    %v70 = vld [vmem:[#allocation4 + $0x78] sm:$0xff]
    %v71 = vld [vmem:[#allocation4 + $0x80] sm:$0xff]
    %v72 = vpack.c.bf16 %v57, %v56
    %v73 = vpack.c.bf16 %v59, %v58
    %v74 = vpack.c.bf16 %v61, %v60
    %v75 = vpack.c.bf16 %v63, %v62
    %v76 = vpack.c.bf16 %v65, %v64
    %v77 = vpack.c.bf16 %v67, %v66
    %v78 = vpack.c.bf16 %v69, %v68
    %v79 = vpack.c.bf16 %v71, %v70
    %v80 = vld [vmem:[#allocation4 + $0x88] sm:$0xff]
    %v81 = vld [vmem:[#allocation4 + $0x90] sm:$0xff]
    %v82 = vld [vmem:[#allocation4 + $0x98] sm:$0xff]
    %v83 = vld [vmem:[#allocation4 + $0xa0] sm:$0xff]
    %v84 = vld [vmem:[#allocation4 + $0xa8] sm:$0xff]
    %v85 = vld [vmem:[#allocation4 + $0xb0] sm:$0xff]
    %v86 = vld [vmem:[#allocation4 + $0xb8] sm:$0xff]
    %v87 = vld [vmem:[#allocation4 + $0xc0] sm:$0xff]
    %v88 = vld [vmem:[#allocation4 + $0xc8] sm:$0xff]
    %v89 = vld [vmem:[#allocation4 + $0xd0] sm:$0xff]
    %v90 = vld [vmem:[#allocation4 + $0xd8] sm:$0xff]
    %v91 = vld [vmem:[#allocation4 + $0xe0] sm:$0xff]
    %v92 = vld [vmem:[#allocation4 + $0xe8] sm:$0xff]
    %v93 = vld [vmem:[#allocation4 + $0xf0] sm:$0xff]
    %v94 = vld [vmem:[#allocation4 + $0xf8] sm:$0xff]
    %v95 = vld [vmem:[#allocation4 + $0x100] sm:$0xff]
    %v96 = vpack.c.bf16 %v81, %v80
    %v97 = vpack.c.bf16 %v83, %v82
    %v98 = vpack.c.bf16 %v85, %v84
    %v99 = vpack.c.bf16 %v87, %v86
    %v100 = vpack.c.bf16 %v89, %v88
    %v101 = vpack.c.bf16 %v91, %v90
    %v102 = vpack.c.bf16 %v93, %v92
    %v103 = vpack.c.bf16 %v95, %v94
    %v104 = vld [vmem:[#allocation6] sm:$0x1]
    %v105 = vld [vmem:[#allocation6 + $0x1] sm:$0x1]
    %v106 = vld [vmem:[#allocation6 + $0x2] sm:$0x1]
    %v107 = vlaneseq
    %v108 = vshrl.u32 %v107, 7
    %v109 = vsub.s32 0, %v108
    %v110 = vrot.slane %v104, %v109
    %vm111 = vcmask 64512
    %v113 = vsel %vm111, %v53, 0
    %vm115 = vcmask 1043456
    %v117 = vsel %vm115, %v55, 0
    %119 = vmatprep.subr.bf16.mxu0 0
    %120 = vmatpush1.bf16.msra.mxu0 0
    %121 = vmatprep.subr.bf16.mxu0 0
    %122 = vmatpush1.bf16.msra.mxu0 0
    %123 = vmatprep.subr.bf16.mxu0 0
    %124 = vmatpush1.bf16.msra.mxu0 0
    %125 = vmatprep.subr.bf16.mxu0 0
    %126 = vmatpush1.bf16.msra.mxu0 0
    %127 = vmatprep.subr.bf16.mxu0 0
    %128 = vmatpush1.bf16.msra.mxu0 0
    %129 = vmatprep.subr.bf16.mxu0 0
    %130 = vmatpush1.bf16.msra.mxu0 0
    %131 = vmatprep.subr.bf16.mxu0 0
    %132 = vmatpush1.bf16.msra.mxu0 0
    %133 = vmatprep.subr.bf16.mxu0 0
    %134 = vmatpush1.bf16.msra.mxu0 %v117
    %135 = vmatprep.subr.bf16.mxu0 0
    %136 = vmatpush2.bf16.msra.mxu0 0
    %137 = vmatprep.subr.bf16.mxu0 0
    %138 = vmatpush2.bf16.msra.mxu0 0
    %139 = vmatprep.subr.bf16.mxu0 0
    %140 = vmatpush2.bf16.msra.mxu0 0
    %141 = vmatprep.subr.bf16.mxu0 0
    %142 = vmatpush2.bf16.msra.mxu0 0
    %143 = vmatprep.subr.bf16.mxu0 0
    %144 = vmatpush2.bf16.msra.mxu0 0
    %145 = vmatprep.subr.bf16.mxu0 0
    %146 = vmatpush2.bf16.msra.mxu0 0
    %147 = vmatprep.subr.bf16.mxu0 0
    %148 = vmatpush2.bf16.msra.mxu0 0
    %149 = vmatprep.subr.bf16.mxu0 0
    %150 = vmatpush2.bf16.msra.mxu0 0
    %151 = vmatprep.mubr.bf16.mxu0 0
    %152 = vmatmul.mubr.bf16.gmra.mxu0 %v113
    %v153 = vpop.f32.mrf.mxu0
    %v154 = vadd.f32 %v110, %v153
    %v155 = vpop.f32.mrf.mxu0
    %v156 = vpop.f32.mrf.mxu0
    %v157 = vpop.f32.mrf.mxu0
    %158 = vdwg.mxu0
    %v159 = vmax.f32 %v154, 0.0
    %v160 = vpack.c.bf16 %v159, %v159
    %v161 = vlaneseq
    %v162 = vshrl.u32 %v161, 7
    %v163 = vsub.s32 0, %v162
    %v164 = vrot.slane %v105, %v163
    %165 = vmatprep.subr.bf16.mxu0 0
    %166 = vmatpush1.bf16.msra.mxu0 %v79
    %167 = vmatprep.subr.bf16.mxu0 0
    %168 = vmatpush1.bf16.msra.mxu0 %v78
    %169 = vmatprep.subr.bf16.mxu0 0
    %170 = vmatpush1.bf16.msra.mxu0 %v77
    %171 = vmatprep.subr.bf16.mxu0 0
    %172 = vmatpush1.bf16.msra.mxu0 %v76
    %173 = vmatprep.subr.bf16.mxu0 0
    %174 = vmatpush1.bf16.msra.mxu0 %v75
    %175 = vmatprep.subr.bf16.mxu0 0
    %176 = vmatpush1.bf16.msra.mxu0 %v74
    %177 = vmatprep.subr.bf16.mxu0 0
    %178 = vmatpush1.bf16.msra.mxu0 %v73
    %179 = vmatprep.subr.bf16.mxu0 0
    %180 = vmatpush1.bf16.msra.mxu0 %v72
    %181 = vmatprep.subr.bf16.mxu0 0
    %182 = vmatpush2.bf16.msra.mxu0 0
    %183 = vmatprep.subr.bf16.mxu0 0
    %184 = vmatpush2.bf16.msra.mxu0 0
    %185 = vmatprep.subr.bf16.mxu0 0
    %186 = vmatpush2.bf16.msra.mxu0 0
    %187 = vmatprep.subr.bf16.mxu0 0
    %188 = vmatpush2.bf16.msra.mxu0 0
    %189 = vmatprep.subr.bf16.mxu0 0
    %190 = vmatpush2.bf16.msra.mxu0 0
    %191 = vmatprep.subr.bf16.mxu0 0
    %192 = vmatpush2.bf16.msra.mxu0 0
    %193 = vmatprep.subr.bf16.mxu0 0
    %194 = vmatpush2.bf16.msra.mxu0 0
    %195 = vmatprep.subr.bf16.mxu0 0
    %196 = vmatpush2.bf16.msra.mxu0 0
    %197 = vmatprep.mubr.bf16.mxu0 0
    %198 = vmatmul.mubr.bf16.gmra.mxu0 %v160
    %v199 = vpop.f32.mrf.mxu0
    %v200 = vadd.f32 %v164, %v199
    %v201 = vpop.f32.mrf.mxu0
    %v202 = vpop.f32.mrf.mxu0
    %v203 = vpop.f32.mrf.mxu0
    %204 = vdwg.mxu0
    %v205 = vmax.f32 %v200, 0.0
    %v206 = vpack.c.bf16 %v205, %v205
    %v207 = vlaneseq
    %v208 = vshrl.u32 %v207, 7
    %v209 = vsub.s32 0, %v208
    %v210 = vrot.slane %v106, %v209
    %211 = vmatprep.subr.bf16.mxu0 0
    %212 = vmatpush1.bf16.msra.mxu0 %v103
    %213 = vmatprep.subr.bf16.mxu0 0
    %214 = vmatpush1.bf16.msra.mxu0 %v102
    %215 = vmatprep.subr.bf16.mxu0 0
    %216 = vmatpush1.bf16.msra.mxu0 %v101
    %217 = vmatprep.subr.bf16.mxu0 0
    %218 = vmatpush1.bf16.msra.mxu0 %v100
    %219 = vmatprep.subr.bf16.mxu0 0
    %220 = vmatpush1.bf16.msra.mxu0 %v99
    %221 = vmatprep.subr.bf16.mxu0 0
    %222 = vmatpush1.bf16.msra.mxu0 %v98
    %223 = vmatprep.subr.bf16.mxu0 0
    %224 = vmatpush1.bf16.msra.mxu0 %v97
    %225 = vmatprep.subr.bf16.mxu0 0
    %226 = vmatpush1.bf16.msra.mxu0 %v96
    %227 = vmatprep.subr.bf16.mxu0 0
    %228 = vmatpush2.bf16.msra.mxu0 0
    %229 = vmatprep.subr.bf16.mxu0 0
    %230 = vmatpush2.bf16.msra.mxu0 0
    %231 = vmatprep.subr.bf16.mxu0 0
    %232 = vmatpush2.bf16.msra.mxu0 0
    %233 = vmatprep.subr.bf16.mxu0 0
    %234 = vmatpush2.bf16.msra.mxu0 0
    %235 = vmatprep.subr.bf16.mxu0 0
    %236 = vmatpush2.bf16.msra.mxu0 0
    %237 = vmatprep.subr.bf16.mxu0 0
    %238 = vmatpush2.bf16.msra.mxu0 0
    %239 = vmatprep.subr.bf16.mxu0 0
    %240 = vmatpush2.bf16.msra.mxu0 0
    %241 = vmatprep.subr.bf16.mxu0 0
    %242 = vmatpush2.bf16.msra.mxu0 0
    %243 = vmatprep.mubr.bf16.mxu0 0
    %244 = vmatmul.mubr.bf16.gmra.mxu0 %v206
    %v245 = vpop.f32.mrf.mxu0
    %v246 = vadd.f32 %v210, %v245
    %v247 = vpop.f32.mrf.mxu0
    %v248 = vpop.f32.mrf.mxu0
    %v249 = vpop.f32.mrf.mxu0
    %250 = vdwg.mxu0
    %v251 = vxor.u32 %v246, 2147483648
    %v252 = vmul.f32 %v251, 1.442695
    %v253 = vpow.pop %v252
    %v254 = vadd.f32 %v253, 1.0
    %v255 = vrcp.pop %v254
    %v256 = vmul.f32 1.0, %v255
    %v257 = vpack.c.bf16 %v256, %v256
    %258 = vst [vmem:[%s3] sm:$0x1] %v257
    // Predicated region
    $region26: #{actor_net_forward.1} parent=1 // pred_check
      _
    $region27: #{actor_net_forward.1} parent=1 // pred_check_branch
      %260 = sbr.rel (0) target = $region29
    $region28: #{actor_net_forward.1} parent=1 // pred_region
      _
    $region29: #{actor_net_forward.1} parent=1 // pred_fallthru
      _
    // Predicated region
    $region30: #{actor_net_forward.1} parent=1 // pred_check
      _
    $region31: #{actor_net_forward.1} parent=1 // pred_check_branch
      %262 = sbr.rel (0) target = $region33
    $region32: #{actor_net_forward.1} parent=1 // pred_region
      _
    $region33: #{actor_net_forward.1} parent=1 // pred_fallthru
      _
    %263 = vsyncpa [#allocation3], 1
    %264 = vsyncpa [#allocation5], 1

</llo_original>
